<compile_context>
chip_gen: v7x
topology: tpu7x:2x2x1
jax: 0.10.0
libtpu: 0.0.40
codegen_flags: <defaults>
</compile_context>

<pallas_src>
import functools
import math

import jax
import jax.numpy as jnp
from jax.experimental import pallas as pl
from jax.experimental.pallas import tpu as pltpu


def _round_up(x, m):
    return ((x + m - 1) // m) * m


_BIG = 1.0e30  # padded-column sentinel for 0.5*||x||^2 (never wins the neg-min)


# ---------------------------------------------------------------------------
# Small-batch path: one monolithic block, scalar outputs in SMEM.
# ---------------------------------------------------------------------------
def _hard_triplet_small_kernel(emb_ref, lab_col_ref, lab_row_ref,
                               sq_col_ref, sq_row_ref,
                               loss_ref, prec_ref, *, n_valid, margin):
    x = emb_ref[...]                                         # (Np, Dp)
    # Gram matrix on the MXU; contracting dim 1 of both operands avoids an
    # explicit x.T (no XLU transpose, no (D,N) VMEM copy).
    gram = jax.lax.dot_general(
        x, x, dimension_numbers=(((1,), (1,)), ((), ())),
        preferred_element_type=jnp.float32)                  # (Np, Np)
    d2 = sq_col_ref[...] + sq_row_ref[...] - 2.0 * gram      # squared distances
    sim = lab_col_ref[...] == lab_row_ref[...]               # int32 compare

    col_valid = jax.lax.broadcasted_iota(jnp.int32, (1, d2.shape[1]), 1) < n_valid
    row_valid = jax.lax.broadcasted_iota(jnp.int32, (d2.shape[0], 1), 0) < n_valid

    # Select-based masking; mine on squared distances and sqrt only the two
    # winners per row (sqrt(clamp(.)) is monotone so selection is unchanged).
    pos = jnp.where(jnp.logical_and(sim, col_valid), d2, -jnp.inf)
    neg = jnp.where(jnp.logical_and(jnp.logical_not(sim), col_valid), d2, jnp.inf)

    ap = jnp.sqrt(jnp.maximum(jnp.max(pos, axis=1, keepdims=True), 1e-12))
    an = jnp.sqrt(jnp.maximum(jnp.min(neg, axis=1, keepdims=True), 1e-12))

    per_row_loss = jnp.maximum(ap - an + margin, 0.0)
    per_row_hit = (an > ap).astype(jnp.float32)

    inv_n = 1.0 / float(n_valid)
    loss_ref[0, 0] = jnp.sum(jnp.where(row_valid, per_row_loss, 0.0)) * inv_n
    prec_ref[0, 0] = jnp.sum(jnp.where(row_valid, per_row_hit, 0.0)) * inv_n


# ---------------------------------------------------------------------------
# Tiled path: grid (N/tm, N/tn); j is a reduction ("arbitrary") axis.  The
# per-row running accumulators live directly in the resident ap/an output
# blocks (their index_map is constant in j).  The inner loop mines on
# m = 0.5*||x_j||^2 - x_i.x_j; ||x_i||^2 (constant along j) is added only to
# the two per-row winners in the j==last epilogue, then sqrt'ed.
# ---------------------------------------------------------------------------
def _hard_triplet_tiled_kernel(emb_i_ref, emb_j_ref, lab_i_ref, lab_j_ref,
                               sq_i_ref, sqh_j_ref, ap_ref, an_ref,
                               *, block_cols, resident_j):
    j = pl.program_id(1)

    @pl.when(j == 0)
    def _():
        ap_ref[...] = jnp.full_like(ap_ref, -jnp.inf)
        an_ref[...] = jnp.full_like(an_ref, jnp.inf)

    xi = emb_i_ref[...]                                      # (tm, Dp)
    if resident_j:
        # Whole padded embedding is VMEM-resident; slice the current column
        # tile (row offset is a multiple of the tile size -> aligned load).
        col0 = pl.multiple_of(j * block_cols, block_cols)
        xj = emb_j_ref[pl.ds(col0, block_cols), :]           # (tn, Dp)
    else:
        xj = emb_j_ref[...]                                  # (tn, Dp)

    gram = jax.lax.dot_general(
        xi, xj, dimension_numbers=(((1,), (1,)), ((), ())),
        preferred_element_type=jnp.float32)                  # (tm, tn) on MXU

    m = sqh_j_ref[...] - gram                                # 0.5*||x_j||^2 - x.x_j
    sim = lab_i_ref[...] == lab_j_ref[...]                   # (tm, tn) bool

    # Padded columns carry a sentinel label (never equal to a real label) so
    # they are excluded from the positive max, and a huge 0.5*||x||^2 so they
    # are excluded from the negative min -> no per-step iota/compare masking.
    pos = jnp.where(sim, m, -jnp.inf)
    neg = jnp.where(sim, jnp.inf, m)

    ap_ref[...] = jnp.maximum(ap_ref[...], jnp.max(pos, axis=1, keepdims=True))
    an_ref[...] = jnp.minimum(an_ref[...], jnp.min(neg, axis=1, keepdims=True))

    @pl.when(j == pl.num_programs(1) - 1)
    def _():
        sq_i = sq_i_ref[...]                                 # (tm, 1)
        ap_ref[...] = jnp.sqrt(jnp.maximum(sq_i + 2.0 * ap_ref[...], 1e-12))
        an_ref[...] = jnp.sqrt(jnp.maximum(sq_i + 2.0 * an_ref[...], 1e-12))


# ---------------------------------------------------------------------------
# Wrapper
# ---------------------------------------------------------------------------
def hard_triplet_loss(emb, label, margin=0.3, *,
                      block_rows=512, block_cols=512,
                      small_batch_threshold=512,
                      bf16_gram=False):
    """emb: [N, D] float32/bfloat16, label: [N] int. Returns (loss, prec)."""
    N, D = emb.shape
    sq = jnp.sum(emb.astype(jnp.float32) ** 2, axis=1)       # f32 row norms

    if emb.dtype == jnp.bfloat16:
        pass                                   # keep bf16 (2-4x MXU, half HBM)
    elif bf16_gram:
        emb = emb.astype(jnp.bfloat16)         # opt-in bf16 Gram, f32 norms
    else:
        emb = emb.astype(jnp.float32)
    lab = label.astype(jnp.int32)

    d_pad = _round_up(max(D, 128), 128)        # lane-dense feature dim
    itemsize = jnp.dtype(emb.dtype).itemsize

    # Per-generation VMEM budget (v7x 64 MiB, v5e/v6e 128 MiB), with headroom
    # for Mosaic internal scratch / semaphores.
    try:
        vmem_cap = int(getattr(pltpu.get_tpu_info(), "vmem_capacity_bytes",
                               64 << 20))
    except Exception:
        vmem_cap = 64 << 20
    budget = int(vmem_cap * 0.85)

    # ----- small-batch fast path (single block, scalar outputs) ------------
    if N <= small_batch_threshold:
        n_pad = _round_up(max(N, 8), 8)
        small_est = (n_pad * d_pad * itemsize          # emb block
                     + 6 * n_pad * n_pad * 4           # gram/d2/sim/pos/neg/...
                     + 8 * n_pad * 4)                  # labels / norms
        if small_est <= (12 << 20):                    # fits v5e default scoped VMEM
            emb_p = jnp.pad(emb, ((0, n_pad - N), (0, d_pad - D)))
            lab_p = jnp.pad(lab, (0, n_pad - N), constant_values=-1)
            sq_p = jnp.pad(sq, (0, n_pad - N))

            kernel = functools.partial(_hard_triplet_small_kernel,
                                       n_valid=N, margin=float(margin))
            loss, prec = pl.pallas_call(
                kernel,
                out_shape=(jax.ShapeDtypeStruct((1, 1), jnp.float32),
                           jax.ShapeDtypeStruct((1, 1), jnp.float32)),
                in_specs=[pl.BlockSpec(memory_space=pltpu.MemorySpace.VMEM)] * 5,
                out_specs=(pl.BlockSpec(memory_space=pltpu.MemorySpace.SMEM),
                           pl.BlockSpec(memory_space=pltpu.MemorySpace.SMEM)),
                compiler_params=pltpu.CompilerParams(
                    vmem_limit_bytes=int(min(max(2 * small_est + (4 << 20),
                                                 16 << 20), budget))),
            )(emb_p, lab_p.reshape(n_pad, 1), lab_p.reshape(1, n_pad),
              sq_p.reshape(n_pad, 1), sq_p.reshape(1, n_pad))
            return loss[0, 0], prec[0, 0]
        # else: fall through to the pipelined tiled path (avoids v5e VMEM
        # pressure and exposed DMA of the monolithic block).

    # ----- tiled path -------------------------------------------------------
    tm, tn = int(block_rows), int(block_cols)
    assert tm % 8 == 0 and tn % 128 == 0, "need block_rows%8==0, block_cols%128==0"
    n_pad = _round_up(N, math.lcm(tm, tn))
    if (n_pad // tm) % 2 == 1:
        # v7x megacore: make the "parallel" row-grid axis even when cheap.
        n_pad_even = _round_up(N, math.lcm(2 * tm, tn))
        if n_pad_even <= int(1.25 * n_pad):
            n_pad = n_pad_even
    pad = n_pad - N

    emb_p = jnp.pad(emb, ((0, pad), (0, d_pad - D)))
    if pad > 0:
        pad_lab = jnp.min(lab) - jnp.int32(1)     # never equals a real label
        lab_p = jnp.concatenate([lab, jnp.full((pad,), pad_lab, jnp.int32)])
        sq_col = jnp.concatenate([sq, jnp.zeros((pad,), jnp.float32)])
        sqh_row = jnp.concatenate([0.5 * sq, jnp.full((pad,), _BIG, jnp.float32)])
    else:
        lab_p, sq_col, sqh_row = lab, sq, 0.5 * sq
    lab_col = lab_p.reshape(n_pad, 1)
    lab_row = lab_p.reshape(1, n_pad)
    sq_col = sq_col.reshape(n_pad, 1)
    sqh_row = sqh_row.reshape(1, n_pad)

    # VMEM planning: keep emb_j fully resident when it fits the budget.
    def _est(resident):
        emb_i = 2 * tm * d_pad * itemsize                     # double-buffered
        emb_j = (2 * n_pad * d_pad * itemsize) if resident \
            else (2 * tn * d_pad * itemsize)
        temps = 8 * tm * tn * 4                               # gram/m/sim/pos/neg
        vecs = 4 * (tm + tn) * 4 + 8 * tm * 4                 # labels/norms/outputs
        return emb_i + emb_j + temps + vecs

    headroom = 8 << 20
    resident_j = (_est(True) + headroom) <= budget
    vmem_limit = int(min(max(_est(resident_j) + headroom, 32 << 20), budget))

    if resident_j:
        emb_j_spec = pl.BlockSpec((n_pad, d_pad), lambda i, j: (0, 0))
    else:
        emb_j_spec = pl.BlockSpec((tn, d_pad), lambda i, j: (j, 0))

    grid = (n_pad // tm, n_pad // tn)
    kernel = functools.partial(_hard_triplet_tiled_kernel,
                               block_cols=tn, resident_j=resident_j)

    ap, an = pl.pallas_call(
        kernel,
        out_shape=(jax.ShapeDtypeStruct((n_pad, 1), jnp.float32),
                   jax.ShapeDtypeStruct((n_pad, 1), jnp.float32)),
        grid_spec=pltpu.PrefetchScalarGridSpec(
            num_scalar_prefetch=0,
            grid=grid,
            in_specs=[
                pl.BlockSpec((tm, d_pad), lambda i, j: (i, 0)),   # emb rows (i-block)
                emb_j_spec,                                       # emb cols (tile / resident)
                pl.BlockSpec((tm, 1), lambda i, j: (i, 0)),       # labels (col layout)
                pl.BlockSpec((1, tn), lambda i, j: (0, j)),       # labels (row layout)
                pl.BlockSpec((tm, 1), lambda i, j: (i, 0)),       # ||x_i||^2
                pl.BlockSpec((1, tn), lambda i, j: (0, j)),       # 0.5*||x_j||^2
            ],
            out_specs=(
                pl.BlockSpec((tm, 1), lambda i, j: (i, 0)),       # dist_ap (accumulator)
                pl.BlockSpec((tm, 1), lambda i, j: (i, 0)),       # dist_an (accumulator)
            ),
        ),
        compiler_params=pltpu.CompilerParams(
            dimension_semantics=("parallel", "arbitrary"),
            vmem_limit_bytes=vmem_limit,
        ),
    )(emb_p, emb_p, lab_col, lab_row, sq_col, sqh_row)

    ap = ap[:N, 0]
    an = an[:N, 0]
    loss = jnp.mean(jnp.maximum(ap - an + float(margin), 0.0))
    prec = jnp.mean((an > ap).astype(jnp.float32))
    return loss, prec


# ---------------------------------------------------------------------------
# Pure-JAX reference (mirrors the PyTorch module's sentinel-based mining).
# ---------------------------------------------------------------------------
def _reference(emb, label, margin=0.3):
    emb = emb.astype(jnp.float32)
    sq = jnp.sum(emb * emb, axis=1, keepdims=True)
    dist = jnp.sqrt(jnp.maximum(sq + sq.T - 2.0 * (emb @ emb.T), 1e-12))
    sim = (label[:, None] == label[None, :]).astype(jnp.float32)
    dist_ap = jnp.max(dist + (-9999999.0) * (1.0 - sim), axis=1)
    dist_an = jnp.min(dist + 9999999.0 * sim, axis=1)
    loss = jnp.mean(jnp.maximum(dist_ap - dist_an + margin, 0.0))
    prec = jnp.mean((dist_an > dist_ap).astype(jnp.float32))
    return loss, prec


if __name__ == "__main__":
    key = jax.random.PRNGKey(0)
    k1, k2, k3 = jax.random.split(key, 3)

    # 1) Small-batch fast path (monolithic block): N=8, D=32 (PK sampling 4x2).
    emb_s = jax.random.normal(k1, (8, 32), dtype=jnp.float32)
    lab_s = jnp.array([0, 0, 1, 1, 2, 2, 3, 3], dtype=jnp.int32)
    loss_s, prec_s = hard_triplet_loss(emb_s, lab_s, margin=0.3)
    jax.block_until_ready((loss_s, prec_s))
    ref_loss_s, ref_prec_s = _reference(emb_s, lab_s, margin=0.3)
    assert jnp.allclose(loss_s, ref_loss_s, atol=1e-4, rtol=1e-4), (loss_s, ref_loss_s)
    assert jnp.allclose(prec_s, ref_prec_s, atol=1e-6), (prec_s, ref_prec_s)

    # 2) Tiled path (grid + resident emb_j + output-block accumulators),
    #    exercised with small tiles: N=200 (padded to 256), D=72 (padded to
    #    128), grid (4, 2).
    emb_t = jax.random.normal(k2, (200, 72), dtype=jnp.float32)
    lab_t = jax.random.randint(k3, (200,), 0, 25, dtype=jnp.int32)
    loss_t, prec_t = hard_triplet_loss(emb_t, lab_t, margin=0.3,
                                       block_rows=64, block_cols=128,
                                       small_batch_threshold=0)
    jax.block_until_ready((loss_t, prec_t))
    ref_loss_t, ref_prec_t = _reference(emb_t, lab_t, margin=0.3)
    assert jnp.allclose(loss_t, ref_loss_t, atol=1e-3, rtol=1e-3), (loss_t, ref_loss_t)
    assert jnp.allclose(prec_t, ref_prec_t, atol=1e-6), (prec_t, ref_prec_t)

    # 3) Opt-in bf16 Gram path (bandwidth/MXU saver on v5e/v6e): run + finite.
    loss_b, prec_b = hard_triplet_loss(emb_t, lab_t, margin=0.3,
                                       block_rows=64, block_cols=128,
                                       small_batch_threshold=0,
                                       bf16_gram=True)
    jax.block_until_ready((loss_b, prec_b))
    assert bool(jnp.isfinite(loss_b)) and bool(jnp.isfinite(prec_b)), (loss_b, prec_b)

    print("KERNEL_OK")
</pallas_src>

<mosaic_0001>
module attributes {stable_mosaic.version = 11 : i64} {
  func.func @_hard_triplet_small_kernel(%arg0: memref<8x128xf32, #tpu.memory_space<vmem>>, %arg1: memref<8x1xi32, #tpu.memory_space<vmem>>, %arg2: memref<1x8xi32, #tpu.memory_space<vmem>>, %arg3: memref<8x1xf32, #tpu.memory_space<vmem>>, %arg4: memref<1x8xf32, #tpu.memory_space<vmem>>, %arg5: memref<1x1xf32, #tpu.memory_space<smem>>, %arg6: memref<1x1xf32, #tpu.memory_space<smem>>) attributes {dimension_semantics = [], scalar_prefetch = 0 : i64, scratch_operands = 0 : i64, tpu.core_type = #tpu.core_type<tc>} {
    %c0 = arith.constant 0 : index
    %c0_0 = arith.constant 0 : index
    %0 = vector.load %arg0[%c0, %c0_0] : memref<8x128xf32, #tpu.memory_space<vmem>>, vector<8x128xf32>
    %cst = arith.constant dense<0.000000e+00> : vector<8x8xf32>
    %1 = tpu.matmul %0, %0, %cst {dimension_numbers = #tpu.dot_dimension_numbers<[1], [1], [0], [0], [0, 0, 1, 0], [], []>} : vector<8x128xf32>, vector<8x128xf32>, vector<8x8xf32> -> vector<8x8xf32>
    %c0_1 = arith.constant 0 : index
    %c0_2 = arith.constant 0 : index
    %2 = vector.load %arg3[%c0_1, %c0_2] : memref<8x1xf32, #tpu.memory_space<vmem>>, vector<8x1xf32>
    %c0_3 = arith.constant 0 : index
    %c0_4 = arith.constant 0 : index
    %3 = vector.load %arg4[%c0_3, %c0_4] : memref<1x8xf32, #tpu.memory_space<vmem>>, vector<1x8xf32>
    %4 = vector.broadcast %2 : vector<8x1xf32> to vector<8x8xf32>
    %5 = vector.broadcast %3 : vector<1x8xf32> to vector<8x8xf32>
    %6 = arith.addf %4, %5 : vector<8x8xf32>
    %cst_5 = arith.constant 2.000000e+00 : f32
    %7 = vector.broadcast %cst_5 : f32 to vector<8x8xf32>
    %8 = arith.mulf %7, %1 : vector<8x8xf32>
    %9 = arith.subf %6, %8 : vector<8x8xf32>
    %c0_6 = arith.constant 0 : index
    %c0_7 = arith.constant 0 : index
    %10 = vector.load %arg1[%c0_6, %c0_7] : memref<8x1xi32, #tpu.memory_space<vmem>>, vector<8x1xi32>
    %c0_8 = arith.constant 0 : index
    %c0_9 = arith.constant 0 : index
    %11 = vector.load %arg2[%c0_8, %c0_9] : memref<1x8xi32, #tpu.memory_space<vmem>>, vector<1x8xi32>
    %12 = vector.broadcast %10 : vector<8x1xi32> to vector<8x8xi32>
    %13 = vector.broadcast %11 : vector<1x8xi32> to vector<8x8xi32>
    %14 = arith.cmpi eq, %12, %13 : vector<8x8xi32>
    %15 = tpu.iota {dimensions = array<i32: 1>} : vector<1x8xi32>
    %c8_i32 = arith.constant 8 : i32
    %16 = vector.broadcast %c8_i32 : i32 to vector<1x8xi32>
    %17 = arith.cmpi slt, %15, %16 : vector<1x8xi32>
    %18 = tpu.iota {dimensions = array<i32: 0>} : vector<8x1xi32>
    %c8_i32_10 = arith.constant 8 : i32
    %19 = vector.broadcast %c8_i32_10 : i32 to vector<8x1xi32>
    %20 = arith.cmpi slt, %18, %19 : vector<8x1xi32>
    %21 = vector.broadcast %17 : vector<1x8xi1> to vector<8x8xi1>
    %22 = arith.andi %14, %21 : vector<8x8xi1>
    %cst_11 = arith.constant 0xFF800000 : f32
    %23 = vector.broadcast %cst_11 : f32 to vector<8x8xf32>
    %24 = arith.select %22, %9, %23 : vector<8x8xi1>, vector<8x8xf32>
    %cst_12 = arith.constant dense<true> : vector<8x8xi1>
    %25 = arith.xori %14, %cst_12 : vector<8x8xi1>
    %26 = vector.broadcast %17 : vector<1x8xi1> to vector<8x8xi1>
    %27 = arith.andi %25, %26 : vector<8x8xi1>
    %cst_13 = arith.constant 0x7F800000 : f32
    %28 = vector.broadcast %cst_13 : f32 to vector<8x8xf32>
    %29 = arith.select %27, %9, %28 : vector<8x8xi1>, vector<8x8xf32>
    %cst_14 = arith.constant dense<0xFF800000> : vector<8xf32>
    %30 = vector.multi_reduction <maximumf>, %24, %cst_14 [1] : vector<8x8xf32> to vector<8xf32>
    %31 = vector.shape_cast %30 : vector<8xf32> to vector<8x1xf32>
    %cst_15 = arith.constant 9.99999996E-13 : f32
    %32 = vector.broadcast %cst_15 : f32 to vector<8x1xf32>
    %33 = arith.maximumf %31, %32 : vector<8x1xf32>
    %34 = math.sqrt %33 : vector<8x1xf32>
    %cst_16 = arith.constant dense<0x7F800000> : vector<8xf32>
    %35 = vector.multi_reduction <minimumf>, %29, %cst_16 [1] : vector<8x8xf32> to vector<8xf32>
    %36 = vector.shape_cast %35 : vector<8xf32> to vector<8x1xf32>
    %cst_17 = arith.constant 9.99999996E-13 : f32
    %37 = vector.broadcast %cst_17 : f32 to vector<8x1xf32>
    %38 = arith.maximumf %36, %37 : vector<8x1xf32>
    %39 = math.sqrt %38 : vector<8x1xf32>
    %40 = arith.subf %34, %39 : vector<8x1xf32>
    %cst_18 = arith.constant 3.000000e-01 : f32
    %41 = vector.broadcast %cst_18 : f32 to vector<8x1xf32>
    %42 = arith.addf %40, %41 : vector<8x1xf32>
    %cst_19 = arith.constant 0.000000e+00 : f32
    %43 = vector.broadcast %cst_19 : f32 to vector<8x1xf32>
    %44 = arith.maximumf %42, %43 : vector<8x1xf32>
    %45 = arith.cmpf ogt, %39, %34 : vector<8x1xf32>
    %46 = arith.extui %45 : vector<8x1xi1> to vector<8x1xi32>
    %47 = arith.sitofp %46 : vector<8x1xi32> to vector<8x1xf32>
    %cst_20 = arith.constant 0.000000e+00 : f32
    %48 = vector.broadcast %cst_20 : f32 to vector<8x1xf32>
    %49 = arith.select %20, %44, %48 : vector<8x1xi1>, vector<8x1xf32>
    %50 = vector.shape_cast %49 : vector<8x1xf32> to vector<1x8x1xf32>
    %cst_21 = arith.constant dense<0.000000e+00> : vector<1xf32>
    %51 = vector.multi_reduction <add>, %50, %cst_21 [1, 2] : vector<1x8x1xf32> to vector<1xf32>
    %52 = vector.shape_cast %51 : vector<1xf32> to vector<1x1x1xf32>
    %53 = vector.extract %52[0, 0, 0] : f32 from vector<1x1x1xf32>
    %cst_22 = arith.constant 1.250000e-01 : f32
    %54 = arith.mulf %53, %cst_22 : f32
    %c0_23 = arith.constant 0 : index
    %c0_24 = arith.constant 0 : index
    %55 = memref.load %arg5[%c0_23, %c0_24] : memref<1x1xf32, #tpu.memory_space<smem>>
    memref.store %54, %arg5[%c0_23, %c0_24] : memref<1x1xf32, #tpu.memory_space<smem>>
    %cst_25 = arith.constant 0.000000e+00 : f32
    %56 = vector.broadcast %cst_25 : f32 to vector<8x1xf32>
    %57 = arith.select %20, %47, %56 : vector<8x1xi1>, vector<8x1xf32>
    %58 = vector.shape_cast %57 : vector<8x1xf32> to vector<1x8x1xf32>
    %cst_26 = arith.constant dense<0.000000e+00> : vector<1xf32>
    %59 = vector.multi_reduction <add>, %58, %cst_26 [1, 2] : vector<1x8x1xf32> to vector<1xf32>
    %60 = vector.shape_cast %59 : vector<1xf32> to vector<1x1x1xf32>
    %61 = vector.extract %60[0, 0, 0] : f32 from vector<1x1x1xf32>
    %cst_27 = arith.constant 1.250000e-01 : f32
    %62 = arith.mulf %61, %cst_27 : f32
    %c0_28 = arith.constant 0 : index
    %c0_29 = arith.constant 0 : index
    %63 = memref.load %arg6[%c0_28, %c0_29] : memref<1x1xf32, #tpu.memory_space<smem>>
    memref.store %62, %arg6[%c0_28, %c0_29] : memref<1x1xf32, #tpu.memory_space<smem>>
    return
  }
}

</mosaic_0001>

<llo_original>
// kernel: tpu_custom_call.1
$region0: #{tpu_custom_call.1}
  #allocation0 [shape = 'u32[]', space=smem, size = 0x4, offset = 0x4, fixed_abs, tag = 'smem constant byte address 0x4 - core index']
  #allocation1 [shape = 'u32[144,128]{1,0:T(1,128)}', space=vmem, size = 0x12000, scoped, tag = 'internal scratch']
  %s0 = inlined_call_operand.vmem [shape: f32[8,128], index: 0, kind: input, shape index: {}]
  %s1 = inlined_call_operand.vmem [shape: s32[8,1], index: 1, kind: input, shape index: {}]
  %s2 = inlined_call_operand.vmem [shape: s32[1,8], index: 2, kind: input, shape index: {}]
  %s3 = inlined_call_operand.vmem [shape: f32[8,1], index: 3, kind: input, shape index: {}]
  %s4 = inlined_call_operand.vmem [shape: f32[1,8], index: 4, kind: input, shape index: {}]
  %s5 = inlined_call_operand.hbm [shape: f32[1,1], index: 5, kind: output, shape index: {0}]
  %s6 = inlined_call_operand.hbm [shape: f32[1,1], index: 6, kind: output, shape index: {1}]
  %7 = xla_tuple %s5, %s6
  %s8 = sld [smem:[#allocation0]]
  $region38: #{tpu_custom_call.1} parent=0
    _
  %s10 = ssub.s32 1, %s8
  %s11 = scalar_select 0, %s10, %s8
  $region1: #{tpu_custom_call.1} parent=0
    #allocation2 [shape = 'u8[512]{0}', space=smem, size = 0x200, scoped, tag = 'output window, operand 0, single buffered']
    #allocation3 [shape = 's32[1]{0}', space=sflag, size = 0x4, scoped, tag = 'scoped memory for tpu_custom_call.1']
    #allocation4 [shape = 'u8[512]{0}', space=smem, size = 0x200, scoped, tag = 'output window, operand 1, single buffered']
    #allocation5 [shape = 's32[1]{0}', space=sflag, size = 0x4, scoped, tag = 'scoped memory for tpu_custom_call.1']
    %12 = vsyncpa [#allocation3], 0
    %13 = vsyncpa [#allocation5], 0
    // Predicated region
    $region2: #{tpu_custom_call.1} parent=1 // pred_check
      _
    $region3: #{tpu_custom_call.1} parent=1 // pred_check_branch
      %15 = sbr.rel (0) target = $region5
    $region4: #{tpu_custom_call.1} parent=1 // pred_region
      _
    $region5: #{tpu_custom_call.1} parent=1 // pred_fallthru
      _
    // Predicated region
    $region6: #{tpu_custom_call.1} parent=1 // pred_check
      _
    $region7: #{tpu_custom_call.1} parent=1 // pred_check_branch
      %17 = sbr.rel (0) target = $region9
    $region8: #{tpu_custom_call.1} parent=1 // pred_region
      _
    $region9: #{tpu_custom_call.1} parent=1 // pred_fallthru
      _
    // Predicated region
    $region10: #{tpu_custom_call.1} parent=1 // pred_check
      _
    $region11: #{tpu_custom_call.1} parent=1 // pred_check_branch
      %19 = sbr.rel (0) target = $region13
    $region12: #{tpu_custom_call.1} parent=1 // pred_region
      _
    $region13: #{tpu_custom_call.1} parent=1 // pred_fallthru
      _
    // Predicated region
    $region14: #{tpu_custom_call.1} parent=1 // pred_check
      _
    $region15: #{tpu_custom_call.1} parent=1 // pred_check_branch
      %21 = sbr.rel (0) target = $region17
    $region16: #{tpu_custom_call.1} parent=1 // pred_region
      _
    $region17: #{tpu_custom_call.1} parent=1 // pred_fallthru
      _
    // Predicated region
    $region18: #{tpu_custom_call.1} parent=1 // pred_check
      _
    $region19: #{tpu_custom_call.1} parent=1 // pred_check_branch
      %23 = sbr.rel (0) target = $region21
    $region20: #{tpu_custom_call.1} parent=1 // pred_region
      _
    $region21: #{tpu_custom_call.1} parent=1 // pred_fallthru
      _
    %v24 = vld [vmem:[%s0] sm:$0xff]
    %25 = vmatprep.subr.mxu0 0.0
    %26 = vmatpush1.xpose.msra.mxu0 %v24
    %27 = vmatprep.subr.mxu0 0.0
    %28 = vmatpush1.xpose.msra.mxu0 0.0
    %29 = vmatprep.subr.mxu0 0.0
    %30 = vmatpush1.xpose.msra.mxu0 0.0
    %31 = vmatprep.subr.mxu0 0.0
    %32 = vmatpush1.xpose.msra.mxu0 0.0
    %33 = vmatprep.subr.mxu0 0.0
    %34 = vmatpush1.xpose.msra.mxu0 0.0
    %35 = vmatprep.subr.mxu0 0.0
    %36 = vmatpush1.xpose.msra.mxu0 0.0
    %37 = vmatprep.subr.mxu0 0.0
    %38 = vmatpush1.xpose.msra.mxu0 0.0
    %39 = vmatprep.subr.mxu0 0.0
    %40 = vmatpush1.xpose.msra.mxu0 0.0
    %41 = vmatprep.subr.mxu0 0.0
    %42 = vmatpush1.xpose.msra.mxu0 0.0
    %43 = vmatprep.subr.mxu0 0.0
    %44 = vmatpush1.xpose.msra.mxu0 0.0
    %45 = vmatprep.subr.mxu0 0.0
    %46 = vmatpush1.xpose.msra.mxu0 0.0
    %47 = vmatprep.subr.mxu0 0.0
    %48 = vmatpush1.xpose.msra.mxu0 0.0
    %49 = vmatprep.subr.mxu0 0.0
    %50 = vmatpush1.xpose.msra.mxu0 0.0
    %51 = vmatprep.subr.mxu0 0.0
    %52 = vmatpush1.xpose.msra.mxu0 0.0
    %53 = vmatprep.subr.mxu0 0.0
    %54 = vmatpush1.xpose.msra.mxu0 0.0
    %55 = vmatprep.subr.mxu0 0.0
    %56 = vmatpush1.xpose.msra.mxu0 0.0
    %57 = vmatprep.subr.mxu0 0.0
    %58 = vmatpush1.xpose.msra.mxu0 0.0
    %59 = vmatprep.subr.mxu0 0.0
    %60 = vmatpush1.xpose.msra.mxu0 0.0
    %61 = vmatprep.subr.mxu0 0.0
    %62 = vmatpush1.xpose.msra.mxu0 0.0
    %63 = vmatprep.subr.mxu0 0.0
    %64 = vmatpush1.xpose.msra.mxu0 0.0
    %65 = vmatprep.subr.mxu0 0.0
    %66 = vmatpush1.xpose.msra.mxu0 0.0
    %67 = vmatprep.subr.mxu0 0.0
    %68 = vmatpush1.xpose.msra.mxu0 0.0
    %69 = vmatprep.subr.mxu0 0.0
    %70 = vmatpush1.xpose.msra.mxu0 0.0
    %71 = vmatprep.subr.mxu0 0.0
    %72 = vmatpush1.xpose.msra.mxu0 0.0
    %73 = vmatprep.subr.mxu0 0.0
    %74 = vmatpush1.xpose.msra.mxu0 0.0
    %75 = vmatprep.subr.mxu0 0.0
    %76 = vmatpush1.xpose.msra.mxu0 0.0
    %77 = vmatprep.subr.mxu0 0.0
    %78 = vmatpush1.xpose.msra.mxu0 0.0
    %79 = vmatprep.subr.mxu0 0.0
    %80 = vmatpush1.xpose.msra.mxu0 0.0
    %81 = vmatprep.subr.mxu0 0.0
    %82 = vmatpush1.xpose.msra.mxu0 0.0
    %83 = vmatprep.subr.mxu0 0.0
    %84 = vmatpush1.xpose.msra.mxu0 0.0
    %85 = vmatprep.subr.mxu0 0.0
    %86 = vmatpush1.xpose.msra.mxu0 0.0
    %87 = vmatprep.subr.mxu0 0.0
    %88 = vmatpush1.xpose.msra.mxu0 0.0
    %89 = vmatprep.mubr.f32.mxu0 0.0
    %90 = vmatmul.mubr.f32.gmra.mrb[0].mxu0 %v24
    %v91 = vpop.f32.mrb[0].mxu0
    %v92 = vadd.f32 0.0, %v91
    %v93 = vpop.f32.mrb[0].mxu0
    %94 = vdwg.mxu0
    %v95 = vld [vmem:[%s3] sm:$0xff]
    %v96 = vld [vmem:[%s4] sm:$0x1]
    %98 = vset.pattern.permute.xlu0 0
    %99 = vperm.xlu0 %98, %v95
    %v100 = vpop.permute.xlu0 %99
    %v103 = vlaneseq
    %v104 = vshrl.u32 %v103, 7
    %v105 = vsub.s32 0, %v104
    %v106 = vrot.slane %v96, %v105
    %v108 = vadd.f32 %v100, %v106
    %v109 = vmul.f32 %v92, 2.0
    %v110 = vsub.f32 %v108, %v109
    %v111 = vld [vmem:[%s1] sm:$0xff]
    %v112 = vld [vmem:[%s2] sm:$0x1]
    %113 = vset.pattern.permute.xlu0 0
    %114 = vperm.xlu0 %113, %v111
    %v115 = vpop.permute.xlu0 %114
    %v116 = vlaneseq
    %v117 = vshrl.u32 %v116, 7
    %v118 = vsub.s32 0, %v117
    %v119 = vrot.slane %v112, %v118
    %vm120 = vcmp.eq.s32.totalorder %v115, %v119
    %v121 = vlaneseq
    %v122 = vand.u32 %v121, 127
    %vm123 = vcmp.lt.s32.totalorder %v122, 8
    %v124 = vlaneseq
    %v125 = vshrl.u32 %v124, 7
    %vm126 = vcmp.lt.s32.totalorder %v125, 8
    %v127 = vsel %vm123, 1, 0
    %vm128 = vcmp.eq.s32.totalorder %v127, 1
    %vm129 = vmand %vm120, %vm128
    %v130 = vsel %vm129, %v110, -inf
    %vm131 = vmxor %vm120, 1
    %vm132 = vmand %vm131, %vm128
    %v133 = vsel %vm132, %v110, inf
    %vm134 = vcmask 64512
    %v135 = vsel %vm134, %v130, -inf
    %136 = vmax.xlane.f32.xlu0 %v135
    %v137 = vpop.xlane.xlu0 %136
    %v138 = vmax.f32 %v137, 1e-12
    %v139 = vrsqrt.pop %v138
    %v140 = vmul.f32 %v138, %v139
    %vm141 = vcmp.eq.f32.partialorder %v138, inf
    %v142 = vsel %vm141, %v138, %v140
    %vm143 = vcmp.eq.f32.partialorder %v138, 0.0
    %v144 = vand.u32 %v138, 2147483648
    %v145 = vsel %vm143, %v144, %v142
    %v146 = vsel %vm134, %v133, inf
    %147 = vmin.xlane.f32.xlu0 %v146
    %v148 = vpop.xlane.xlu0 %147
    %v149 = vmax.f32 %v148, 1e-12
    %v150 = vrsqrt.pop %v149
    %v151 = vmul.f32 %v149, %v150
    %vm152 = vcmp.eq.f32.partialorder %v149, inf
    %v153 = vsel %vm152, %v149, %v151
    %vm154 = vcmp.eq.f32.partialorder %v149, 0.0
    %v155 = vand.u32 %v149, 2147483648
    %v156 = vsel %vm154, %v155, %v153
    %v157 = vsub.f32 %v145, %v156
    %v158 = vadd.f32 %v157, 0.3
    %v159 = vmax.f32 %v158, 0.0
    %vm160 = vcmp.gt.f32.partialorder %v156, %v145
    %v161 = vsel %vm160, 1, 0
    %v162 = vcvt.s32.f32 %v161
    %v163 = vsel %vm126, %v159, 0.0
    %vm164 = vcmask 7168
    %v165 = vsel %vm164, %v163, 0.0
    %166 = vadd.xlane.f32.xlu0 %v165
    %v167 = vpop.xlane.xlu0 %166
    %v168 = vrot.slane %v167, 4
    %v169 = vadd.f32 %v167, %v168
    %v170 = vrot.slane %v169, 2
    %v171 = vadd.f32 %v169, %v170
    %v172 = vrot.slane %v171, 1
    %v173 = vadd.f32 %v171, %v172
    %s174 = vtos %v173
    %s175 = smul.f32 %s174, 0.125
    %s176 = scalar_lea.smem [#allocation2], 0
    %177 = sst [smem:[%s176]] %s175
    %v178 = vsel %vm126, %v162, 0.0
    %v179 = vsel %vm164, %v178, 0.0
    %180 = vadd.xlane.f32.xlu0 %v179
    %v181 = vpop.xlane.xlu0 %180
    %v182 = vrot.slane %v181, 4
    %v183 = vadd.f32 %v181, %v182
    %v184 = vrot.slane %v183, 2
    %v185 = vadd.f32 %v183, %v184
    %v186 = vrot.slane %v185, 1
    %v187 = vadd.f32 %v185, %v186
    %s188 = vtos %v187
    %s189 = smul.f32 %s188, 0.125
    %s190 = scalar_lea.smem [#allocation4], 0
    %191 = sst [smem:[%s190]] %s189
    // Predicated region
    $region22: #{tpu_custom_call.1} parent=1 // pred_check
      _
    $region23: #{tpu_custom_call.1} parent=1 // pred_check_branch
      %193 = sbr.rel (0) target = $region25
    $region24: #{tpu_custom_call.1} parent=1 // pred_region
      %s195 = ssub.s32 16, 16
      %196 = vsyncadd [#allocation3], %s195
      %199 = dma.smem_to_hbm [#allocation2], 16, %s5, [#allocation3]
    $region25: #{tpu_custom_call.1} parent=1 // pred_fallthru
      _
    // Predicated region
    $region26: #{tpu_custom_call.1} parent=1 // pred_check
      _
    $region27: #{tpu_custom_call.1} parent=1 // pred_check_branch
      %201 = sbr.rel (0) target = $region29
    $region28: #{tpu_custom_call.1} parent=1 // pred_region
      %s203 = ssub.s32 16, 16
      %204 = vsyncadd [#allocation5], %s203
      %207 = dma.smem_to_hbm [#allocation4], 16, %s6, [#allocation5]
    $region29: #{tpu_custom_call.1} parent=1 // pred_fallthru
      _
    // Predicated region
    $region30: #{tpu_custom_call.1} parent=1 // pred_check
      _
    $region31: #{tpu_custom_call.1} parent=1 // pred_check_branch
      %209 = sbr.rel (0) target = $region33
    $region32: #{tpu_custom_call.1} parent=1 // pred_region
      %210 = dma.done [#allocation3], 16
    $region33: #{tpu_custom_call.1} parent=1 // pred_fallthru
      _
    // Predicated region
    $region34: #{tpu_custom_call.1} parent=1 // pred_check
      _
    $region35: #{tpu_custom_call.1} parent=1 // pred_check_branch
      %212 = sbr.rel (0) target = $region37
    $region36: #{tpu_custom_call.1} parent=1 // pred_region
      %213 = dma.done [#allocation5], 16
    $region37: #{tpu_custom_call.1} parent=1 // pred_fallthru
      _
    %214 = sfence
    %215 = vsyncpa [#allocation3], 1
    %216 = vsyncpa [#allocation5], 1

</llo_original>
